<compile_context>
chip_gen: v7x
topology: tpu7x:2x2x1
jax: 0.10.0
libtpu: 0.0.40
codegen_flags: <defaults>
</compile_context>

<pallas_src>
import functools

import jax
import jax.numpy as jnp
import numpy as np
from jax.experimental import pallas as pl
from jax.experimental.pallas import tpu as pltpu

NMOD = 4  # number of sub-models in the ensemble


def multimodel_kernel(x_ref, wbig_ref, bbig_ref, w2t_ref, b2t_ref, o_ref, *, bf16_eup):
    """One batch tile of the weighted-ensemble forward pass.

    x_ref    : (tn, D)    f32   input rows (cast to bf16 in-vreg for the MXU)
    wbig_ref : (D, 2F)    bf16  [all expert layer-1 weights | lane-expanded gate weights]
    bbig_ref : (1, 2F)    f32   matching fused biases
    w2t_ref  : (F, 1)     f32   flattened expert readout weights (column)
    b2t_ref  : (F, 1)     f32   b2_j / H broadcast over expert j's H rows (column)
    o_ref    : (1, 1, tn) f32   lane-dense per-row outputs
    """
    F = w2t_ref.shape[0]                  # NMOD * H
    inv_h = 1.0 / (F // NMOD)             # 1 / H  (static python float)

    x = x_ref[...].astype(jnp.bfloat16)   # in-vreg cast; x arrives straight from HBM as f32

    # One fused MXU matmul produces layer-1 pre-activations and gate logits together.
    fused = jnp.dot(x, wbig_ref[...], preferred_element_type=jnp.float32)
    fused = fused + bbig_ref[...]                                    # (tn, 2F) f32

    # Single tile-aligned XLU transpose so every later per-row scalar lands lane-dense
    # (rows -> lanes).  Avoids (tn,1) masked stores and a 128x-sparse final divide.
    fused_t = fused.T                                                # (2F, tn)
    z1 = fused_t[:F, :]                                              # layer-1 logits
    zg = fused_t[F:, :]                                              # gate logits (lane-expanded)
    if bf16_eup:          # v6e / v7x only: bf16 EUP ~2x transcendental throughput
        z1 = z1.astype(jnp.bfloat16)
        zg = zg.astype(jnp.bfloat16)

    h = jnp.tanh(z1).astype(jnp.float32)                             # (F, tn)
    # sigmoid(z) = 0.5 * (tanh(z/2) + 1): exactly one EUP op per element.
    w = (0.5 * (jnp.tanh(0.5 * zg) + 1.0)).astype(jnp.float32)       # (F, tn)

    # val  = sum_j w_j * (h_j . w2_j + b2_j): VPU multiplies + one sublane reduce.
    # summ = sum_j w_j (each gate repeated H times -> rescale by 1/H).
    num = jnp.sum(w * (h * w2t_ref[...] + b2t_ref[...]), axis=0, keepdims=True)  # (1, tn)
    den = jnp.sum(w, axis=0, keepdims=True) * inv_h                  # (1, tn)

    o_ref[...] = (num / den).reshape(o_ref.shape)                    # exact divide, dense store


def _use_bf16_transcendentals() -> bool:
    """bf16 EUP exists on v6e / v7x only; keep f32 elementwise math elsewhere (v5e, older)."""
    try:
        kind = jax.devices()[0].device_kind.lower()
    except Exception:
        return False
    return ("v6" in kind) or ("v7" in kind) or ("7x" in kind)


def _pick_tn(n_rows: int) -> int:
    """Batch-tile height: multiple of 128, capped at 1024 so f32 intermediates stay well
    inside every generation's scoped VMEM (v5e 16 MiB / v7x 32 MiB defaults), preferring an
    even number of tiles so v7x's two TensorCores split the parallel grid axis evenly."""
    if n_rows <= 256:
        return 128
    if n_rows <= 2048:
        return 128 * pl.cdiv(pl.cdiv(n_rows, 2), 128)
    return 1024


def prepare_fused_params(params):
    """Fold the per-expert parameters into the fused tensors the kernel consumes.
    Static per model -> compute ONCE at init and reuse across forward calls."""
    ww, bw, w1, b1, w2, b2 = params
    D, H = w1.shape[1], w1.shape[2]
    F = NMOD * H

    # Layer-1 weights of all experts side-by-side on the lane axis, then the gating
    # weights lane-expanded (gate column j repeated H times) concatenated on, so a single
    # (tn, D) @ (D, 2F) bf16 MXU matmul yields both layer-1 and gate pre-activations.
    w1_flat = jnp.transpose(w1, (1, 0, 2)).reshape(D, F)             # (D, F)
    ww_exp = jnp.repeat(ww, H, axis=1)                               # (D, F)
    wbig = jnp.concatenate([w1_flat, ww_exp], axis=1).astype(jnp.bfloat16)   # (D, 2F)

    bbig = jnp.concatenate(
        [b1.reshape(1, F), jnp.repeat(bw.reshape(-1), H).reshape(1, F)],
        axis=1).astype(jnp.float32)                                  # (1, 2F)

    # Readout weights as an (F, 1) column (kernel works in transposed orientation);
    # b2_j / H broadcast over expert j's H rows so sum_rows(w * b2t) = sum_j w_j * b2_j.
    w2t = w2.reshape(F, 1).astype(jnp.float32)
    b2t = (jnp.repeat(b2.reshape(NMOD), H) / H).reshape(F, 1).astype(jnp.float32)
    return wbig, bbig, w2t, b2t


def multimodel_forward(x, fused_params, *, tn=None):
    """wfcn (soft-weighting) branch of MultiModelTch.forward."""
    wbig, bbig, w2t, b2t = fused_params
    N, D = x.shape
    two_f = wbig.shape[1]
    F = two_f // 2

    if tn is None:
        tn = _pick_tn(N)
    # Partial tail tile (N % tn != 0) is padded by Pallas on the read side; the extra
    # output lanes are sliced off below and nothing reduces across rows.
    n_steps = pl.cdiv(N, tn)

    kernel = functools.partial(multimodel_kernel, bf16_eup=_use_bf16_transcendentals())

    out = pl.pallas_call(
        kernel,
        out_shape=jax.ShapeDtypeStruct((n_steps, 1, tn), jnp.float32),   # lane-dense output slab
        grid_spec=pltpu.PrefetchScalarGridSpec(
            num_scalar_prefetch=0,
            grid=(n_steps,),
            in_specs=[
                pl.BlockSpec((tn, D), lambda i: (i, 0)),        # x tile (f32, cast in-kernel)
                pl.BlockSpec((D, two_f), lambda i: (0, 0)),     # fused layer-1 + gating weights
                pl.BlockSpec((1, two_f), lambda i: (0, 0)),     # fused biases
                pl.BlockSpec((F, 1), lambda i: (0, 0)),         # flattened readout weights
                pl.BlockSpec((F, 1), lambda i: (0, 0)),         # b2_j / H column
            ],
            out_specs=pl.BlockSpec((1, 1, tn), lambda i: (i, 0, 0)),
        ),
        compiler_params=pltpu.CompilerParams(
            dimension_semantics=("parallel",),
            vmem_limit_bytes=32 * 1024 * 1024,   # working set ~6 MiB at tn=1024; safe on v5e/v6e/v7x
        ),
    )(x, wbig, bbig, w2t, b2t)
    return out.reshape(-1)[:N]


def reference_forward(x, params):
    """Pure-JAX f32 mirror of MultiModelTch.forward (wflag branch)."""
    ww, bw, w1, b1, w2, b2 = params
    w = jax.nn.sigmoid(x @ ww + bw)                                  # wfcn(x): (N, nmod)
    val = w[:, 0] * (jnp.tanh(x @ w1[0] + b1[0]) @ w2[0] + b2[0]).reshape(-1)
    summ = w[:, 0]
    for j in range(1, NMOD):
        val = val + w[:, j] * (jnp.tanh(x @ w1[j] + b1[j]) @ w2[j] + b2[j]).reshape(-1)
        summ = summ + w[:, j]
    return val / summ


if __name__ == "__main__":
    N, D, H = 256, 32, 32

    key = jax.random.PRNGKey(0)
    kx, kww, kbw, kw1, kb1, kw2, kb2 = jax.random.split(key, 7)

    x = jax.random.normal(kx, (N, D), dtype=jnp.float32)

    ww = 0.1 * jax.random.normal(kww, (D, NMOD), dtype=jnp.float32)
    bw = 0.1 * jax.random.normal(kbw, (NMOD,), dtype=jnp.float32)
    w1 = 0.1 * jax.random.normal(kw1, (NMOD, D, H), dtype=jnp.float32)
    b1 = 0.1 * jax.random.normal(kb1, (NMOD, H), dtype=jnp.float32)
    w2 = 0.1 * jax.random.normal(kw2, (NMOD, H, 1), dtype=jnp.float32)
    b2 = 0.1 * jax.random.normal(kb2, (NMOD, 1, 1), dtype=jnp.float32)

    params = (ww, bw, w1, b1, w2, b2)

    # Fused parameter prep is done once, outside the per-call path.
    fused_params = jax.block_until_ready(prepare_fused_params(params))

    out = jax.block_until_ready(multimodel_forward(x, fused_params))
    ref = jax.block_until_ready(reference_forward(x, params))

    assert out.shape == (N,)
    # bf16 matmul inputs (and bf16 transcendentals on v6e/v7x) => compare against the f32
    # reference with relaxed tolerances (observed error is ~1e-3).
    np.testing.assert_allclose(np.asarray(out), np.asarray(ref), rtol=2e-2, atol=2e-2)

    print("KERNEL_OK")
</pallas_src>

<mosaic_0001>
module attributes {stable_mosaic.version = 11 : i64} {
  func.func @multimodel_kernel(%arg0: i32, %arg1: memref<128x32xf32, #tpu.memory_space<vmem>>, %arg2: memref<32x256xbf16, #tpu.memory_space<vmem>>, %arg3: memref<1x256xf32, #tpu.memory_space<vmem>>, %arg4: memref<128x1xf32, #tpu.memory_space<vmem>>, %arg5: memref<128x1xf32, #tpu.memory_space<vmem>>, %arg6: memref<1x1x128xf32, #tpu.memory_space<vmem>>) attributes {dimension_semantics = [#tpu.dimension_semantics<parallel>], iteration_bounds = array<i64: 2>, scalar_prefetch = 0 : i64, scratch_operands = 0 : i64, tpu.core_type = #tpu.core_type<tc>, window_params = [{transform_indices = @transform_0, window_bounds = array<i64: 128, 32>}, {pipeline_mode = #tpu.pipeline_mode<synchronous>, transform_indices = @transform_1, window_bounds = array<i64: 32, 256>}, {pipeline_mode = #tpu.pipeline_mode<synchronous>, transform_indices = @transform_2, window_bounds = array<i64: 1, 256>}, {pipeline_mode = #tpu.pipeline_mode<synchronous>, transform_indices = @transform_3, window_bounds = array<i64: 128, 1>}, {pipeline_mode = #tpu.pipeline_mode<synchronous>, transform_indices = @transform_4, window_bounds = array<i64: 128, 1>}, {transform_indices = @transform_5, window_bounds = array<i64: 1, 1, 128>}]} {
    %c0 = arith.constant 0 : index
    %c0_0 = arith.constant 0 : index
    %0 = vector.load %arg1[%c0, %c0_0] : memref<128x32xf32, #tpu.memory_space<vmem>>, vector<128x32xf32>
    %1 = arith.truncf %0 : vector<128x32xf32> to vector<128x32xbf16>
    %c0_1 = arith.constant 0 : index
    %c0_2 = arith.constant 0 : index
    %2 = vector.load %arg2[%c0_1, %c0_2] : memref<32x256xbf16, #tpu.memory_space<vmem>>, vector<32x256xbf16>
    %cst = arith.constant dense<0.000000e+00> : vector<128x256xf32>
    %3 = tpu.matmul %1, %2, %cst {dimension_numbers = #tpu.dot_dimension_numbers<[1], [0], [0], [1], [0, 0, 1, 1], [], []>} : vector<128x32xbf16>, vector<32x256xbf16>, vector<128x256xf32> -> vector<128x256xf32>
    %c0_3 = arith.constant 0 : index
    %c0_4 = arith.constant 0 : index
    %4 = vector.load %arg3[%c0_3, %c0_4] : memref<1x256xf32, #tpu.memory_space<vmem>>, vector<1x256xf32>
    %5 = vector.broadcast %4 : vector<1x256xf32> to vector<128x256xf32>
    %6 = arith.addf %3, %5 : vector<128x256xf32>
    %7 = tpu.transpose %6, [1, 0] : vector<128x256xf32> -> vector<256x128xf32>
    %8 = vector.extract_strided_slice %7 {offsets = [0, 0], sizes = [128, 128], strides = [1, 1]} : vector<256x128xf32> to vector<128x128xf32>
    %9 = vector.extract_strided_slice %7 {offsets = [128, 0], sizes = [128, 128], strides = [1, 1]} : vector<256x128xf32> to vector<128x128xf32>
    %10 = math.tanh %8 : vector<128x128xf32>
    %cst_5 = arith.constant 5.000000e-01 : f32
    %11 = vector.broadcast %cst_5 : f32 to vector<128x128xf32>
    %12 = arith.mulf %11, %9 : vector<128x128xf32>
    %13 = math.tanh %12 : vector<128x128xf32>
    %cst_6 = arith.constant 1.000000e+00 : f32
    %14 = vector.broadcast %cst_6 : f32 to vector<128x128xf32>
    %15 = arith.addf %13, %14 : vector<128x128xf32>
    %cst_7 = arith.constant 5.000000e-01 : f32
    %16 = vector.broadcast %cst_7 : f32 to vector<128x128xf32>
    %17 = arith.mulf %16, %15 : vector<128x128xf32>
    %c0_8 = arith.constant 0 : index
    %c0_9 = arith.constant 0 : index
    %18 = vector.load %arg4[%c0_8, %c0_9] : memref<128x1xf32, #tpu.memory_space<vmem>>, vector<128x1xf32>
    %19 = vector.broadcast %18 : vector<128x1xf32> to vector<128x128xf32>
    %20 = arith.mulf %10, %19 : vector<128x128xf32>
    %c0_10 = arith.constant 0 : index
    %c0_11 = arith.constant 0 : index
    %21 = vector.load %arg5[%c0_10, %c0_11] : memref<128x1xf32, #tpu.memory_space<vmem>>, vector<128x1xf32>
    %22 = vector.broadcast %21 : vector<128x1xf32> to vector<128x128xf32>
    %23 = arith.addf %20, %22 : vector<128x128xf32>
    %24 = arith.mulf %17, %23 : vector<128x128xf32>
    %cst_12 = arith.constant dense<0.000000e+00> : vector<128xf32>
    %25 = vector.multi_reduction <add>, %24, %cst_12 [0] : vector<128x128xf32> to vector<128xf32>
    %26 = vector.shape_cast %25 : vector<128xf32> to vector<1x128xf32>
    %cst_13 = arith.constant dense<0.000000e+00> : vector<128xf32>
    %27 = vector.multi_reduction <add>, %17, %cst_13 [0] : vector<128x128xf32> to vector<128xf32>
    %28 = vector.shape_cast %27 : vector<128xf32> to vector<1x128xf32>
    %cst_14 = arith.constant 3.125000e-02 : f32
    %29 = vector.broadcast %cst_14 : f32 to vector<1x128xf32>
    %30 = arith.mulf %28, %29 : vector<1x128xf32>
    %31 = arith.divf %26, %30 : vector<1x128xf32>
    %32 = vector.shape_cast %31 : vector<1x128xf32> to vector<1x1x128xf32>
    %c0_15 = arith.constant 0 : index
    %c0_16 = arith.constant 0 : index
    %c0_17 = arith.constant 0 : index
    %33 = vector.load %arg6[%c0_15, %c0_16, %c0_17] : memref<1x1x128xf32, #tpu.memory_space<vmem>>, vector<1x1x128xf32>
    tpu.vector_store %arg6[%c0_15, %c0_16, %c0_17], %32 {strides = array<i32>} : memref<1x1x128xf32, #tpu.memory_space<vmem>>, vector<1x1x128xf32>,
    return
  }
  func.func @transform_0(%arg0: i32) -> (i32, i32) {
    %c0_i32 = arith.constant 0 : i32
    %c0_i32_0 = arith.constant 0 : i32
    return %arg0, %c0_i32 : i32, i32
  }
  func.func @transform_1(%arg0: i32) -> (i32, i32) {
    %c0_i32 = arith.constant 0 : i32
    %c0_i32_0 = arith.constant 0 : i32
    %c0_i32_1 = arith.constant 0 : i32
    return %c0_i32, %c0_i32_0 : i32, i32
  }
  func.func @transform_2(%arg0: i32) -> (i32, i32) {
    %c0_i32 = arith.constant 0 : i32
    %c0_i32_0 = arith.constant 0 : i32
    %c0_i32_1 = arith.constant 0 : i32
    return %c0_i32, %c0_i32_0 : i32, i32
  }
  func.func @transform_3(%arg0: i32) -> (i32, i32) {
    %c0_i32 = arith.constant 0 : i32
    %c0_i32_0 = arith.constant 0 : i32
    %c0_i32_1 = arith.constant 0 : i32
    return %c0_i32, %c0_i32_0 : i32, i32
  }
  func.func @transform_4(%arg0: i32) -> (i32, i32) {
    %c0_i32 = arith.constant 0 : i32
    %c0_i32_0 = arith.constant 0 : i32
    %c0_i32_1 = arith.constant 0 : i32
    return %c0_i32, %c0_i32_0 : i32, i32
  }
  func.func @transform_5(%arg0: i32) -> (i32, i32, i32) {
    %c0_i32 = arith.constant 0 : i32
    %c0_i32_0 = arith.constant 0 : i32
    %c0_i32_1 = arith.constant 0 : i32
    return %arg0, %c0_i32, %c0_i32_0 : i32, i32, i32
  }
}

</mosaic_0001>

<llo_original>
// kernel: tpu_custom_call.1
$region0: #{tpu_custom_call.1}
  #allocation0 [shape = 'u32[]', space=smem, size = 0x4, offset = 0x4, fixed_abs, tag = 'smem constant byte address 0x4 - core index']
  #allocation1 [shape = 'u32[144,128]{1,0:T(1,128)}', space=vmem, size = 0x12000, scoped, tag = 'internal scratch']
  %s0 = inlined_call_operand.vmem [shape: f32[256,32], index: 0, kind: input, shape index: {}]
  %s1 = inlined_call_operand.vmem [shape: bf16[32,256], index: 1, kind: input, shape index: {}]
  %s2 = inlined_call_operand.vmem [shape: f32[1,256], index: 2, kind: input, shape index: {}]
  %s3 = inlined_call_operand.vmem [shape: f32[128,1], index: 3, kind: input, shape index: {}]
  %s4 = inlined_call_operand.vmem [shape: f32[128,1], index: 4, kind: input, shape index: {}]
  %s5 = inlined_call_operand.hbm [shape: f32[2,1,128], index: 5, kind: output, shape index: {}]
  %s6 = sld [smem:[#allocation0]]
  $region53: #{tpu_custom_call.1} parent=0
    _
  %s8 = ssub.s32 1, %s6
  %s9 = scalar_select 0, %s8, %s6
  $region1: #{tpu_custom_call.1} parent=0
    #allocation2 [shape = 'u8[1024]{0}', space=vmem, size = 0x400, scoped, tag = 'output window, operand 0']
    #allocation3 [shape = 's32[2]{0}', space=sflag, size = 0x8, scoped, tag = 'scoped memory for tpu_custom_call.1']
    %10 = vsyncpa [#allocation3], 0
    %s11 = scalar_lea.sflag [#allocation3], 1
    %12 = vsyncpa %s11, 0
    loop: start=0, step=1, limit=4
    $region2: #{tpu_custom_call.1} parent=1 // loop_pre_header
      _
    $region3: #{tpu_custom_call.1} parent=1 // loop_header
      %s14 = sphi 0, %s18
      %p15 = scmp.ge.s32.totalorder %s14, 4
      %s24 = sphi 0, %s26
      %s27 = sphi 0, %s24
      %s28 = sphi 0, %s27
      %s44 = sphi 0, %s28
      %s48 = sphi 0, %s48
      %s50 = sphi 0, %s48
      %s51 = sphi 0, %s50
      %s65 = sphi 0, %s51
      %s69 = sphi 0, %s69
      %s71 = sphi 0, %s69
      %s72 = sphi 0, %s71
      %s86 = sphi 0, %s72
      %s90 = sphi 0, %s90
      %s92 = sphi 0, %s90
      %s93 = sphi 0, %s92
      %s107 = sphi 0, %s93
      %s111 = sphi 0, %s111
      %s113 = sphi 0, %s111
      %s114 = sphi 0, %s113
      %s128 = sphi 0, %s114
      %s134 = sphi 0, %s136
      %s137 = sphi 0, %s134
      %s138 = sphi 0, %s137
      %s154 = sphi 0, %s138
    $region4: #{tpu_custom_call.1} parent=1 // loop_header_branch
      %17 = sbr.rel (%p15) target = $region8
    $region5: #{tpu_custom_call.1} parent=1 // loop_body
      %s19 = ssub.s32 %s14, 1
      %s20 = ssub.s32 %s14, 2
      %s21 = sadd.s32 %s14, 1
      %s22 = ssub.s32 %s14, %s21
      %p23 = scmp.eq.s32.totalorder %s22, 0
      %s25 = sadd.s32 %s24, 1
      %s26 = scalar_select %p23, %s24, %s25
      %p29 = pneg %p23
      %p30 = scmp.eq.s32.totalorder %s14, 1
      %p31 = por %p29, %p30
      %p32 = scmp.ne.s32.totalorder %s24, %s27
      %p33 = scmp.eq.s32.totalorder %s14, 0
      %p34 = por %p32, %p33
      %p35 = scmp.ne.s32.totalorder %s24, %s27
      %p36 = scmp.eq.s32.totalorder %s19, 1
      %p37 = por %p35, %p36
      %p38 = scmp.ne.s32.totalorder %s27, %s28
      %p39 = scmp.eq.s32.totalorder %s19, 0
      %p40 = por %p38, %p39
      %p41 = scmp.ne.s32.totalorder %s27, %s28
      %p42 = scmp.eq.s32.totalorder %s20, 1
      %p43 = por %p41, %p42
      %p45 = scmp.ne.s32.totalorder %s28, %s44
      %p46 = scmp.eq.s32.totalorder %s20, 0
      %p47 = por %p45, %p46
      %s49 = sadd.s32 %s48, 1
      %p52 = scmp.eq.s32.totalorder %s14, 1
      %p53 = scmp.ne.s32.totalorder %s48, %s50
      %p54 = scmp.eq.s32.totalorder %s14, 0
      %p55 = por %p53, %p54
      %p56 = scmp.ne.s32.totalorder %s48, %s50
      %p57 = scmp.eq.s32.totalorder %s19, 1
      %p58 = por %p56, %p57
      %p59 = scmp.ne.s32.totalorder %s50, %s51
      %p60 = scmp.eq.s32.totalorder %s19, 0
      %p61 = por %p59, %p60
      %p62 = scmp.ne.s32.totalorder %s50, %s51
      %p63 = scmp.eq.s32.totalorder %s20, 1
      %p64 = por %p62, %p63
      %p66 = scmp.ne.s32.totalorder %s51, %s65
      %p67 = scmp.eq.s32.totalorder %s20, 0
      %p68 = por %p66, %p67
      %s70 = sadd.s32 %s69, 1
      %p73 = scmp.eq.s32.totalorder %s14, 1
      %p74 = scmp.ne.s32.totalorder %s69, %s71
      %p75 = scmp.eq.s32.totalorder %s14, 0
      %p76 = por %p74, %p75
      %p77 = scmp.ne.s32.totalorder %s69, %s71
      %p78 = scmp.eq.s32.totalorder %s19, 1
      %p79 = por %p77, %p78
      %p80 = scmp.ne.s32.totalorder %s71, %s72
      %p81 = scmp.eq.s32.totalorder %s19, 0
      %p82 = por %p80, %p81
      %p83 = scmp.ne.s32.totalorder %s71, %s72
      %p84 = scmp.eq.s32.totalorder %s20, 1
      %p85 = por %p83, %p84
      %p87 = scmp.ne.s32.totalorder %s72, %s86
      %p88 = scmp.eq.s32.totalorder %s20, 0
      %p89 = por %p87, %p88
      %s91 = sadd.s32 %s90, 1
      %p94 = scmp.eq.s32.totalorder %s14, 1
      %p95 = scmp.ne.s32.totalorder %s90, %s92
      %p96 = scmp.eq.s32.totalorder %s14, 0
      %p97 = por %p95, %p96
      %p98 = scmp.ne.s32.totalorder %s90, %s92
      %p99 = scmp.eq.s32.totalorder %s19, 1
      %p100 = por %p98, %p99
      %p101 = scmp.ne.s32.totalorder %s92, %s93
      %p102 = scmp.eq.s32.totalorder %s19, 0
      %p103 = por %p101, %p102
      %p104 = scmp.ne.s32.totalorder %s92, %s93
      %p105 = scmp.eq.s32.totalorder %s20, 1
      %p106 = por %p104, %p105
      %p108 = scmp.ne.s32.totalorder %s93, %s107
      %p109 = scmp.eq.s32.totalorder %s20, 0
      %p110 = por %p108, %p109
      %s112 = sadd.s32 %s111, 1
      %p115 = scmp.eq.s32.totalorder %s14, 1
      %p116 = scmp.ne.s32.totalorder %s111, %s113
      %p117 = scmp.eq.s32.totalorder %s14, 0
      %p118 = por %p116, %p117
      %p119 = scmp.ne.s32.totalorder %s111, %s113
      %p120 = scmp.eq.s32.totalorder %s19, 1
      %p121 = por %p119, %p120
      %p122 = scmp.ne.s32.totalorder %s113, %s114
      %p123 = scmp.eq.s32.totalorder %s19, 0
      %p124 = por %p122, %p123
      %p125 = scmp.ne.s32.totalorder %s113, %s114
      %p126 = scmp.eq.s32.totalorder %s20, 1
      %p127 = por %p125, %p126
      %p129 = scmp.ne.s32.totalorder %s114, %s128
      %p130 = scmp.eq.s32.totalorder %s20, 0
      %p131 = por %p129, %p130
      %s132 = ssub.s32 %s14, %s21
      %p133 = scmp.eq.s32.totalorder %s132, 0
      %s135 = sadd.s32 %s134, 1
      %s136 = scalar_select %p133, %s134, %s135
      %p139 = pneg %p133
      %p140 = scmp.eq.s32.totalorder %s14, 1
      %p141 = por %p139, %p140
      %p142 = scmp.ne.s32.totalorder %s134, %s137
      %p143 = scmp.eq.s32.totalorder %s14, 0
      %p144 = por %p142, %p143
      %p145 = scmp.ne.s32.totalorder %s134, %s137
      %p146 = scmp.eq.s32.totalorder %s19, 1
      %p147 = por %p145, %p146
      %p148 = scmp.ne.s32.totalorder %s137, %s138
      %p149 = scmp.eq.s32.totalorder %s19, 0
      %p150 = por %p148, %p149
      %p151 = scmp.ne.s32.totalorder %s137, %s138
      %p152 = scmp.eq.s32.totalorder %s20, 1
      %p153 = por %p151, %p152
      %p155 = scmp.ne.s32.totalorder %s138, %s154
      %p156 = scmp.eq.s32.totalorder %s20, 0
      %p157 = por %p155, %p156
      %p158 = scmp.le.s32.totalorder 1, %s14
      %p159 = scmp.lt.s32.totalorder %s14, 3
      %p160 = pnand %p158, %p159
      %p161 = pneg %p160
      // Predicated region
      $region9: #{tpu_custom_call.1} parent=5 // pred_check
        _
      $region10: #{tpu_custom_call.1} parent=5 // pred_check_branch
        %163 = sbr.rel (%p160) target = $region12
      $region11: #{tpu_custom_call.1} parent=5 // pred_region
        %s164 = ssub.s32 %s14, 1
        // Predicated region
        $region13: #{tpu_custom_call.1} parent=11 // pred_check
          %p165 = pneg %p61
        $region14: #{tpu_custom_call.1} parent=11 // pred_check_branch
          %167 = sbr.rel (%p165) target = $region16
        $region15: #{tpu_custom_call.1} parent=11 // pred_region
          _
        $region16: #{tpu_custom_call.1} parent=11 // pred_fallthru
          _
        // Predicated region
        $region17: #{tpu_custom_call.1} parent=11 // pred_check
          %p168 = pneg %p82
        $region18: #{tpu_custom_call.1} parent=11 // pred_check_branch
          %170 = sbr.rel (%p168) target = $region20
        $region19: #{tpu_custom_call.1} parent=11 // pred_region
          _
        $region20: #{tpu_custom_call.1} parent=11 // pred_fallthru
          _
        // Predicated region
        $region21: #{tpu_custom_call.1} parent=11 // pred_check
          %p171 = pneg %p103
        $region22: #{tpu_custom_call.1} parent=11 // pred_check_branch
          %173 = sbr.rel (%p171) target = $region24
        $region23: #{tpu_custom_call.1} parent=11 // pred_region
          _
        $region24: #{tpu_custom_call.1} parent=11 // pred_fallthru
          _
        // Predicated region
        $region25: #{tpu_custom_call.1} parent=11 // pred_check
          %p174 = pneg %p124
        $region26: #{tpu_custom_call.1} parent=11 // pred_check_branch
          %176 = sbr.rel (%p174) target = $region28
        $region27: #{tpu_custom_call.1} parent=11 // pred_region
          _
        $region28: #{tpu_custom_call.1} parent=11 // pred_fallthru
          _
      $region12: #{tpu_custom_call.1} parent=5 // pred_fallthru
        _
      %p177 = scmp.lt.s32.totalorder %s14, 2
      // Predicated region
      $region29: #{tpu_custom_call.1} parent=5 // pred_check
        %p178 = pneg %p177
      $region30: #{tpu_custom_call.1} parent=5 // pred_check_branch
        %180 = sbr.rel (%p178) target = $region32
      $region31: #{tpu_custom_call.1} parent=5 // pred_region
        // Predicated region
        $region33: #{tpu_custom_call.1} parent=31 // pred_check
          %p181 = pneg %p34
        $region34: #{tpu_custom_call.1} parent=31 // pred_check_branch
          %183 = sbr.rel (%p181) target = $region36
        $region35: #{tpu_custom_call.1} parent=31 // pred_region
          %s184 = smul.u32 16, %s14
          %p185 = scmp.lt.s32.totalorder %s184, 31
          %s186 = scalar_select %p185, %s184, 31
          %s187 = smul.addr %s186, 8
          %s188 = scalar_lea.vmem %s0, %s187
          %s189 = smul.u32 16, %s14
        $region36: #{tpu_custom_call.1} parent=31 // pred_fallthru
          _
      $region32: #{tpu_custom_call.1} parent=5 // pred_fallthru
        _
      %p190 = scmp.le.s32.totalorder 1, %s14
      %p191 = scmp.lt.s32.totalorder %s14, 3
      %p192 = pnand %p190, %p191
      %p193 = pneg %p192
      // Predicated region
      $region37: #{tpu_custom_call.1} parent=5 // pred_check
        _
      $region38: #{tpu_custom_call.1} parent=5 // pred_check_branch
        %195 = sbr.rel (%p192) target = $region40
      $region39: #{tpu_custom_call.1} parent=5 // pred_region
        %s196 = ssub.s32 %s14, 1
        %s197 = smul.u32 16, %s19
        %p198 = scmp.lt.s32.totalorder %s197, 31
        %s199 = scalar_select %p198, %s197, 31
        %s200 = smul.addr %s199, 8
        %s201 = scalar_lea.vmem %s0, %s200
        %p202 = pneg %p40
        %p203 = pneg %p37
        %p204 = pneg %p61
        %p205 = pneg %p58
        %p206 = pneg %p82
        %p207 = pneg %p79
        %p208 = pneg %p103
        %p209 = pneg %p100
        %p210 = pneg %p124
        %p211 = pneg %p121
        %p212 = pneg %p150
        %p213 = pneg %p147
        %s214 = sand.u32 %s137, 1
        %s215 = scalar_lea.sflag [#allocation3], %s214
        %s216 = sand.u32 %s137, 1
        %s217 = scalar_lea.vmem [#allocation2], %s216
        %s218 = smul.u32 16, %s19
        %p219 = scmp.lt.s32.totalorder %s218, 31
        %s220 = scalar_select %p219, %s218, 31
        %s221 = smul.addr %s220, 8
        %s222 = scalar_lea.vmem %s0, %s221
        %s223 = smul.u32 16, %s19
        %v225 = vld [vmem:[%s222] sm:$0xff]
        %v226 = vld [vmem:[%s222 + $0x8] sm:$0xff]
        %v227 = vld [vmem:[%s222 + $0x10] sm:$0xff]
        %v228 = vld [vmem:[%s222 + $0x18] sm:$0xff]
        %v229 = vld [vmem:[%s222 + $0x20] sm:$0xff]
        %v230 = vld [vmem:[%s222 + $0x28] sm:$0xff]
        %v231 = vld [vmem:[%s222 + $0x30] sm:$0xff]
        %v232 = vld [vmem:[%s222 + $0x38] sm:$0xff]
        %v233 = vld [vmem:[%s222 + $0x40] sm:$0xff]
        %v234 = vld [vmem:[%s222 + $0x48] sm:$0xff]
        %v235 = vld [vmem:[%s222 + $0x50] sm:$0xff]
        %v236 = vld [vmem:[%s222 + $0x58] sm:$0xff]
        %v237 = vld [vmem:[%s222 + $0x60] sm:$0xff]
        %v238 = vld [vmem:[%s222 + $0x68] sm:$0xff]
        %v239 = vld [vmem:[%s222 + $0x70] sm:$0xff]
        %v240 = vld [vmem:[%s222 + $0x78] sm:$0xff]
        %v241 = vpack.c.bf16 %v226, %v225
        %v242 = vpack.c.bf16 %v228, %v227
        %v243 = vpack.c.bf16 %v230, %v229
        %v244 = vpack.c.bf16 %v232, %v231
        %v245 = vpack.c.bf16 %v234, %v233
        %v246 = vpack.c.bf16 %v236, %v235
        %v247 = vpack.c.bf16 %v238, %v237
        %v248 = vpack.c.bf16 %v240, %v239
        %v249 = vld [vmem:[%s1] sm:$0xff]
        %v250 = vld [vmem:[%s1 + $0x8] sm:$0xff]
        %v251 = vld [vmem:[%s1 + $0x10] sm:$0xff]
        %v252 = vld [vmem:[%s1 + $0x18] sm:$0xff]
        %v253 = vld [vmem:[%s2] sm:$0x3]
        %v255 = vlaneseq
        %v256 = vshrl.u32 %v255, 7
        %v257 = vsub.s32 0, %v256
        %v258 = vrot.slane %v253, %v257
        %v259 = vlaneseq
        %v260 = vshrl.u32 %v259, 7
        %v261 = vsub.s32 1, %v260
        %v262 = vrot.slane %v253, %v261
        %v269 = vunpack.c.l.b16 %v249
        %v270 = vunpack.c.h.b16 %v249
        %v271 = vunpack.c.l.b16 %v250
        %v272 = vunpack.c.h.b16 %v250
        %v273 = vunpack.c.l.b16 %v251
        %v274 = vunpack.c.h.b16 %v251
        %v275 = vunpack.c.l.b16 %v252
        %v276 = vunpack.c.h.b16 %v252
        %v277 = vpack.c.b16 %v271, %v269
        %v278 = vpack.c.b16 %v272, %v270
        %v279 = vpack.c.b16 %v275, %v273
        %v280 = vpack.c.b16 %v276, %v274
        %vm285 = vcmask 261120
        %v287 = vsel %vm285, %v241, 0
        %v290 = vsel %vm285, %v242, 0
        %v293 = vsel %vm285, %v243, 0
        %v296 = vsel %vm285, %v244, 0
        %v299 = vsel %vm285, %v245, 0
        %v302 = vsel %vm285, %v246, 0
        %v305 = vsel %vm285, %v247, 0
        %v308 = vsel %vm285, %v248, 0
        %310 = vmatprep.subr.bf16.mxu0 %v278
        %311 = vmatpush1.bf16.msra.mxu0 %v277
        %312 = vmatprep.subr.bf16.mxu0 %v280
        %313 = vmatpush1.bf16.msra.mxu0 %v279
        %314 = vmatprep.subr.bf16.mxu0 0
        %315 = vmatpush1.bf16.msra.mxu0 0
        %316 = vmatprep.subr.bf16.mxu0 0
        %317 = vmatpush1.bf16.msra.mxu0 0
        %318 = vmatprep.subr.bf16.mxu0 0
        %319 = vmatpush1.bf16.msra.mxu0 0
        %320 = vmatprep.subr.bf16.mxu0 0
        %321 = vmatpush1.bf16.msra.mxu0 0
        %322 = vmatprep.subr.bf16.mxu0 0
        %323 = vmatpush1.bf16.msra.mxu0 0
        %324 = vmatprep.subr.bf16.mxu0 0
        %325 = vmatpush1.bf16.msra.mxu0 0
        %326 = vmatprep.subr.bf16.mxu0 0
        %327 = vmatpush1.bf16.msra.mxu0 0
        %328 = vmatprep.subr.bf16.mxu0 0
        %329 = vmatpush1.bf16.msra.mxu0 0
        %330 = vmatprep.subr.bf16.mxu0 0
        %331 = vmatpush1.bf16.msra.mxu0 0
        %332 = vmatprep.subr.bf16.mxu0 0
        %333 = vmatpush1.bf16.msra.mxu0 0
        %334 = vmatprep.subr.bf16.mxu0 0
        %335 = vmatpush1.bf16.msra.mxu0 0
        %336 = vmatprep.subr.bf16.mxu0 0
        %337 = vmatpush1.bf16.msra.mxu0 0
        %338 = vmatprep.subr.bf16.mxu0 0
        %339 = vmatpush1.bf16.msra.mxu0 0
        %340 = vmatprep.subr.bf16.mxu0 0
        %341 = vmatpush1.bf16.msra.mxu0 0
        %342 = vmatprep.mubr.bf16.mxu0 0
        %343 = vmatmul.mubr.bf16.gmra.mrb[0].mxu0 %v287
        %v344 = vpop.f32.mrb[0].mxu0
        %v345 = vadd.f32 %v258, %v344
        %v346 = vpop.f32.mrb[0].mxu0
        %v347 = vadd.f32 %v262, %v346
        %v348 = vpop.f32.mrb[0].mxu0
        %v349 = vadd.f32 %v258, %v348
        %v350 = vpop.f32.mrb[0].mxu0
        %v351 = vadd.f32 %v262, %v350
        %352 = vmatprep.mubr.bf16.mxu0 0
        %353 = vmatmul.mubr.bf16.gmra.mrb[0].mxu0 %v290
        %v354 = vpop.f32.mrb[0].mxu0
        %v355 = vadd.f32 %v258, %v354
        %v356 = vpop.f32.mrb[0].mxu0
        %v357 = vadd.f32 %v262, %v356
        %v358 = vpop.f32.mrb[0].mxu0
        %v359 = vadd.f32 %v258, %v358
        %v360 = vpop.f32.mrb[0].mxu0
        %v361 = vadd.f32 %v262, %v360
        %362 = vmatprep.mubr.bf16.mxu0 0
        %363 = vmatmul.mubr.bf16.gmra.mrb[0].mxu0 %v293
        %v364 = vpop.f32.mrb[0].mxu0
        %v365 = vadd.f32 %v258, %v364
        %v366 = vpop.f32.mrb[0].mxu0
        %v367 = vadd.f32 %v262, %v366
        %v368 = vpop.f32.mrb[0].mxu0
        %v369 = vadd.f32 %v258, %v368
        %v370 = vpop.f32.mrb[0].mxu0
        %v371 = vadd.f32 %v262, %v370
        %372 = vmatprep.mubr.bf16.mxu0 0
        %373 = vmatmul.mubr.bf16.gmra.mrb[0].mxu0 %v296
        %v374 = vpop.f32.mrb[0].mxu0
        %v375 = vadd.f32 %v258, %v374
        %v376 = vpop.f32.mrb[0].mxu0
        %v377 = vadd.f32 %v262, %v376
        %v378 = vpop.f32.mrb[0].mxu0
        %v379 = vadd.f32 %v258, %v378
        %v380 = vpop.f32.mrb[0].mxu0
        %v381 = vadd.f32 %v262, %v380
        %382 = vmatprep.mubr.bf16.mxu0 0
        %383 = vmatmul.mubr.bf16.gmra.mrb[0].mxu0 %v299
        %v384 = vpop.f32.mrb[0].mxu0
        %v385 = vadd.f32 %v258, %v384
        %v386 = vpop.f32.mrb[0].mxu0
        %v387 = vadd.f32 %v262, %v386
        %v388 = vpop.f32.mrb[0].mxu0
        %v389 = vadd.f32 %v258, %v388
        %v390 = vpop.f32.mrb[0].mxu0
        %v391 = vadd.f32 %v262, %v390
        %392 = vmatprep.mubr.bf16.mxu0 0
        %393 = vmatmul.mubr.bf16.gmra.mrb[0].mxu0 %v302
        %v394 = vpop.f32.mrb[0].mxu0
        %v395 = vadd.f32 %v258, %v394
        %v396 = vpop.f32.mrb[0].mxu0
        %v397 = vadd.f32 %v262, %v396
        %v398 = vpop.f32.mrb[0].mxu0
        %v399 = vadd.f32 %v258, %v398
        %v400 = vpop.f32.mrb[0].mxu0
        %v401 = vadd.f32 %v262, %v400
        %402 = vmatprep.mubr.bf16.mxu0 0
        %403 = vmatmul.mubr.bf16.gmra.mrb[0].mxu0 %v305
        %v404 = vpop.f32.mrb[0].mxu0
        %v405 = vadd.f32 %v258, %v404
        %v406 = vpop.f32.mrb[0].mxu0
        %v407 = vadd.f32 %v262, %v406
        %v408 = vpop.f32.mrb[0].mxu0
        %v409 = vadd.f32 %v258, %v408
        %v410 = vpop.f32.mrb[0].mxu0
        %v411 = vadd.f32 %v262, %v410
        %412 = vmatprep.mubr.bf16.mxu0 0
        %413 = vmatmul.mubr.bf16.gmra.mrb[0].mxu0 %v308
        %v414 = vpop.f32.mrb[0].mxu0
        %v415 = vadd.f32 %v258, %v414
        %v416 = vpop.f32.mrb[0].mxu0
        %v417 = vadd.f32 %v262, %v416
        %v418 = vpop.f32.mrb[0].mxu0
        %v419 = vadd.f32 %v258, %v418
        %v420 = vpop.f32.mrb[0].mxu0
        %v421 = vadd.f32 %v262, %v420
        %422 = vdwg.mxu0
        %423 = vxpose.xlu0.b32.start [1/16] %v345, 128
        %424 = vxpose.xlu0.b32.cont [2/16] %v349, 128
        %425 = vxpose.xlu0.b32.cont [3/16] %v355, 128
        %426 = vxpose.xlu0.b32.cont [4/16] %v359, 128
        %427 = vxpose.xlu0.b32.cont [5/16] %v365, 128
        %428 = vxpose.xlu0.b32.cont [6/16] %v369, 128
        %429 = vxpose.xlu0.b32.cont [7/16] %v375, 128
        %430 = vxpose.xlu0.b32.cont [8/16] %v379, 128
        %431 = vxpose.xlu0.b32.cont [9/16] %v385, 128
        %432 = vxpose.xlu0.b32.cont [10/16] %v389, 128
        %433 = vxpose.xlu0.b32.cont [11/16] %v395, 128
        %434 = vxpose.xlu0.b32.cont [12/16] %v399, 128
        %435 = vxpose.xlu0.b32.cont [13/16] %v405, 128
        %436 = vxpose.xlu0.b32.cont [14/16] %v409, 128
        %437 = vxpose.xlu0.b32.cont [15/16] %v415, 128
        %438 = vxpose.xlu0.b32.end [16/16] %v419, 128
        %v439 = vpop.trf.xlu0
        %v440 = vpop.trf.xlu0
        %v441 = vpop.trf.xlu0
        %v442 = vpop.trf.xlu0
        %v443 = vpop.trf.xlu0
        %v444 = vpop.trf.xlu0
        %v445 = vpop.trf.xlu0
        %v446 = vpop.trf.xlu0
        %v447 = vpop.trf.xlu0
        %v448 = vpop.trf.xlu0
        %v449 = vpop.trf.xlu0
        %v450 = vpop.trf.xlu0
        %v451 = vpop.trf.xlu0
        %v452 = vpop.trf.xlu0
        %v453 = vpop.trf.xlu0
        %v454 = vpop.trf.xlu0
        %455 = vxpose.xlu0.b32.start [1/16] %v347, 128
        %456 = vxpose.xlu0.b32.cont [2/16] %v351, 128
        %457 = vxpose.xlu0.b32.cont [3/16] %v357, 128
        %458 = vxpose.xlu0.b32.cont [4/16] %v361, 128
        %459 = vxpose.xlu0.b32.cont [5/16] %v367, 128
        %460 = vxpose.xlu0.b32.cont [6/16] %v371, 128
        %461 = vxpose.xlu0.b32.cont [7/16] %v377, 128
        %462 = vxpose.xlu0.b32.cont [8/16] %v381, 128
        %463 = vxpose.xlu0.b32.cont [9/16] %v387, 128
        %464 = vxpose.xlu0.b32.cont [10/16] %v391, 128
        %465 = vxpose.xlu0.b32.cont [11/16] %v397, 128
        %466 = vxpose.xlu0.b32.cont [12/16] %v401, 128
        %467 = vxpose.xlu0.b32.cont [13/16] %v407, 128
        %468 = vxpose.xlu0.b32.cont [14/16] %v411, 128
        %469 = vxpose.xlu0.b32.cont [15/16] %v417, 128
        %470 = vxpose.xlu0.b32.end [16/16] %v421, 128
        %v471 = vpop.trf.xlu0
        %v472 = vpop.trf.xlu0
        %v473 = vpop.trf.xlu0
        %v474 = vpop.trf.xlu0
        %v475 = vpop.trf.xlu0
        %v476 = vpop.trf.xlu0
        %v477 = vpop.trf.xlu0
        %v478 = vpop.trf.xlu0
        %v479 = vpop.trf.xlu0
        %v480 = vpop.trf.xlu0
        %v481 = vpop.trf.xlu0
        %v482 = vpop.trf.xlu0
        %v483 = vpop.trf.xlu0
        %v484 = vpop.trf.xlu0
        %v485 = vpop.trf.xlu0
        %v486 = vpop.trf.xlu0
        %v487 = vtanh.pop %v439
        %v488 = vtanh.pop %v440
        %v489 = vtanh.pop %v441
        %v490 = vtanh.pop %v442
        %v491 = vtanh.pop %v443
        %v492 = vtanh.pop %v444
        %v493 = vtanh.pop %v445
        %v494 = vtanh.pop %v446
        %v495 = vtanh.pop %v447
        %v496 = vtanh.pop %v448
        %v497 = vtanh.pop %v449
        %v498 = vtanh.pop %v450
        %v499 = vtanh.pop %v451
        %v500 = vtanh.pop %v452
        %v501 = vtanh.pop %v453
        %v502 = vtanh.pop %v454
        %v503 = vmul.f32 %v471, 0.5
        %v504 = vmul.f32 %v472, 0.5
        %v505 = vmul.f32 %v473, 0.5
        %v506 = vmul.f32 %v474, 0.5
        %v507 = vmul.f32 %v475, 0.5
        %v508 = vmul.f32 %v476, 0.5
        %v509 = vmul.f32 %v477, 0.5
        %v510 = vmul.f32 %v478, 0.5
        %v511 = vmul.f32 %v479, 0.5
        %v512 = vmul.f32 %v480, 0.5
        %v513 = vmul.f32 %v481, 0.5
        %v514 = vmul.f32 %v482, 0.5
        %v515 = vmul.f32 %v483, 0.5
        %v516 = vmul.f32 %v484, 0.5
        %v517 = vmul.f32 %v485, 0.5
        %v518 = vmul.f32 %v486, 0.5
        %v519 = vtanh.pop %v503
        %v520 = vtanh.pop %v504
        %v521 = vtanh.pop %v505
        %v522 = vtanh.pop %v506
        %v523 = vtanh.pop %v507
        %v524 = vtanh.pop %v508
        %v525 = vtanh.pop %v509
        %v526 = vtanh.pop %v510
        %v527 = vtanh.pop %v511
        %v528 = vtanh.pop %v512
        %v529 = vtanh.pop %v513
        %v530 = vtanh.pop %v514
        %v531 = vtanh.pop %v515
        %v532 = vtanh.pop %v516
        %v533 = vtanh.pop %v517
        %v534 = vtanh.pop %v518
        %v535 = vadd.f32 %v519, 1.0
        %v536 = vadd.f32 %v520, 1.0
        %v537 = vadd.f32 %v521, 1.0
        %v538 = vadd.f32 %v522, 1.0
        %v539 = vadd.f32 %v523, 1.0
        %v540 = vadd.f32 %v524, 1.0
        %v541 = vadd.f32 %v525, 1.0
        %v542 = vadd.f32 %v526, 1.0
        %v543 = vadd.f32 %v527, 1.0
        %v544 = vadd.f32 %v528, 1.0
        %v545 = vadd.f32 %v529, 1.0
        %v546 = vadd.f32 %v530, 1.0
        %v547 = vadd.f32 %v531, 1.0
        %v548 = vadd.f32 %v532, 1.0
        %v549 = vadd.f32 %v533, 1.0
        %v550 = vadd.f32 %v534, 1.0
        %v551 = vmul.f32 %v535, 0.5
        %v552 = vmul.f32 %v536, 0.5
        %v553 = vmul.f32 %v537, 0.5
        %v554 = vmul.f32 %v538, 0.5
        %v555 = vmul.f32 %v539, 0.5
        %v556 = vmul.f32 %v540, 0.5
        %v557 = vmul.f32 %v541, 0.5
        %v558 = vmul.f32 %v542, 0.5
        %v559 = vmul.f32 %v543, 0.5
        %v560 = vmul.f32 %v544, 0.5
        %v561 = vmul.f32 %v545, 0.5
        %v562 = vmul.f32 %v546, 0.5
        %v563 = vmul.f32 %v547, 0.5
        %v564 = vmul.f32 %v548, 0.5
        %v565 = vmul.f32 %v549, 0.5
        %v566 = vmul.f32 %v550, 0.5
        %v567 = vld [vmem:[%s3] sm:$0xff]
        %v568 = vld [vmem:[%s3 + $0x8] sm:$0xff]
        %v569 = vld [vmem:[%s3 + $0x10] sm:$0xff]
        %v570 = vld [vmem:[%s3 + $0x18] sm:$0xff]
        %v571 = vld [vmem:[%s3 + $0x20] sm:$0xff]
        %v572 = vld [vmem:[%s3 + $0x28] sm:$0xff]
        %v573 = vld [vmem:[%s3 + $0x30] sm:$0xff]
        %v574 = vld [vmem:[%s3 + $0x38] sm:$0xff]
        %v575 = vld [vmem:[%s3 + $0x40] sm:$0xff]
        %v576 = vld [vmem:[%s3 + $0x48] sm:$0xff]
        %v577 = vld [vmem:[%s3 + $0x50] sm:$0xff]
        %v578 = vld [vmem:[%s3 + $0x58] sm:$0xff]
        %v579 = vld [vmem:[%s3 + $0x60] sm:$0xff]
        %v580 = vld [vmem:[%s3 + $0x68] sm:$0xff]
        %v581 = vld [vmem:[%s3 + $0x70] sm:$0xff]
        %v582 = vld [vmem:[%s3 + $0x78] sm:$0xff]
        %584 = vset.pattern.permute.xlu0 0
        %585 = vperm.xlu0 %584, %v567
        %v586 = vpop.permute.xlu0 %585
        %589 = vset.pattern.permute.xlu0 0
        %590 = vperm.xlu0 %589, %v568
        %v591 = vpop.permute.xlu0 %590
        %594 = vset.pattern.permute.xlu0 0
        %595 = vperm.xlu0 %594, %v569
        %v596 = vpop.permute.xlu0 %595
        %599 = vset.pattern.permute.xlu0 0
        %600 = vperm.xlu0 %599, %v570
        %v601 = vpop.permute.xlu0 %600
        %604 = vset.pattern.permute.xlu0 0
        %605 = vperm.xlu0 %604, %v571
        %v606 = vpop.permute.xlu0 %605
        %609 = vset.pattern.permute.xlu0 0
        %610 = vperm.xlu0 %609, %v572
        %v611 = vpop.permute.xlu0 %610
        %614 = vset.pattern.permute.xlu0 0
        %615 = vperm.xlu0 %614, %v573
        %v616 = vpop.permute.xlu0 %615
        %619 = vset.pattern.permute.xlu0 0
        %620 = vperm.xlu0 %619, %v574
        %v621 = vpop.permute.xlu0 %620
        %624 = vset.pattern.permute.xlu0 0
        %625 = vperm.xlu0 %624, %v575
        %v626 = vpop.permute.xlu0 %625
        %629 = vset.pattern.permute.xlu0 0
        %630 = vperm.xlu0 %629, %v576
        %v631 = vpop.permute.xlu0 %630
        %634 = vset.pattern.permute.xlu0 0
        %635 = vperm.xlu0 %634, %v577
        %v636 = vpop.permute.xlu0 %635
        %639 = vset.pattern.permute.xlu0 0
        %640 = vperm.xlu0 %639, %v578
        %v641 = vpop.permute.xlu0 %640
        %644 = vset.pattern.permute.xlu0 0
        %645 = vperm.xlu0 %644, %v579
        %v646 = vpop.permute.xlu0 %645
        %649 = vset.pattern.permute.xlu0 0
        %650 = vperm.xlu0 %649, %v580
        %v651 = vpop.permute.xlu0 %650
        %654 = vset.pattern.permute.xlu0 0
        %655 = vperm.xlu0 %654, %v581
        %v656 = vpop.permute.xlu0 %655
        %659 = vset.pattern.permute.xlu0 0
        %660 = vperm.xlu0 %659, %v582
        %v661 = vpop.permute.xlu0 %660
        %v663 = vmul.f32 %v487, %v586
        %v664 = vmul.f32 %v488, %v591
        %v665 = vmul.f32 %v489, %v596
        %v666 = vmul.f32 %v490, %v601
        %v667 = vmul.f32 %v491, %v606
        %v668 = vmul.f32 %v492, %v611
        %v669 = vmul.f32 %v493, %v616
        %v670 = vmul.f32 %v494, %v621
        %v671 = vmul.f32 %v495, %v626
        %v672 = vmul.f32 %v496, %v631
        %v673 = vmul.f32 %v497, %v636
        %v674 = vmul.f32 %v498, %v641
        %v675 = vmul.f32 %v499, %v646
        %v676 = vmul.f32 %v500, %v651
        %v677 = vmul.f32 %v501, %v656
        %v678 = vmul.f32 %v502, %v661
        %v679 = vld [vmem:[%s4] sm:$0xff]
        %v680 = vld [vmem:[%s4 + $0x8] sm:$0xff]
        %v681 = vld [vmem:[%s4 + $0x10] sm:$0xff]
        %v682 = vld [vmem:[%s4 + $0x18] sm:$0xff]
        %v683 = vld [vmem:[%s4 + $0x20] sm:$0xff]
        %v684 = vld [vmem:[%s4 + $0x28] sm:$0xff]
        %v685 = vld [vmem:[%s4 + $0x30] sm:$0xff]
        %v686 = vld [vmem:[%s4 + $0x38] sm:$0xff]
        %v687 = vld [vmem:[%s4 + $0x40] sm:$0xff]
        %v688 = vld [vmem:[%s4 + $0x48] sm:$0xff]
        %v689 = vld [vmem:[%s4 + $0x50] sm:$0xff]
        %v690 = vld [vmem:[%s4 + $0x58] sm:$0xff]
        %v691 = vld [vmem:[%s4 + $0x60] sm:$0xff]
        %v692 = vld [vmem:[%s4 + $0x68] sm:$0xff]
        %v693 = vld [vmem:[%s4 + $0x70] sm:$0xff]
        %v694 = vld [vmem:[%s4 + $0x78] sm:$0xff]
        %696 = vset.pattern.permute.xlu0 0
        %697 = vperm.xlu0 %696, %v679
        %v698 = vpop.permute.xlu0 %697
        %701 = vset.pattern.permute.xlu0 0
        %702 = vperm.xlu0 %701, %v680
        %v703 = vpop.permute.xlu0 %702
        %706 = vset.pattern.permute.xlu0 0
        %707 = vperm.xlu0 %706, %v681
        %v708 = vpop.permute.xlu0 %707
        %711 = vset.pattern.permute.xlu0 0
        %712 = vperm.xlu0 %711, %v682
        %v713 = vpop.permute.xlu0 %712
        %716 = vset.pattern.permute.xlu0 0
        %717 = vperm.xlu0 %716, %v683
        %v718 = vpop.permute.xlu0 %717
        %721 = vset.pattern.permute.xlu0 0
        %722 = vperm.xlu0 %721, %v684
        %v723 = vpop.permute.xlu0 %722
        %726 = vset.pattern.permute.xlu0 0
        %727 = vperm.xlu0 %726, %v685
        %v728 = vpop.permute.xlu0 %727
        %731 = vset.pattern.permute.xlu0 0
        %732 = vperm.xlu0 %731, %v686
        %v733 = vpop.permute.xlu0 %732
        %736 = vset.pattern.permute.xlu0 0
        %737 = vperm.xlu0 %736, %v687
        %v738 = vpop.permute.xlu0 %737
        %741 = vset.pattern.permute.xlu0 0
        %742 = vperm.xlu0 %741, %v688
        %v743 = vpop.permute.xlu0 %742
        %746 = vset.pattern.permute.xlu0 0
        %747 = vperm.xlu0 %746, %v689
        %v748 = vpop.permute.xlu0 %747
        %751 = vset.pattern.permute.xlu0 0
        %752 = vperm.xlu0 %751, %v690
        %v753 = vpop.permute.xlu0 %752
        %756 = vset.pattern.permute.xlu0 0
        %757 = vperm.xlu0 %756, %v691
        %v758 = vpop.permute.xlu0 %757
        %761 = vset.pattern.permute.xlu0 0
        %762 = vperm.xlu0 %761, %v692
        %v763 = vpop.permute.xlu0 %762
        %766 = vset.pattern.permute.xlu0 0
        %767 = vperm.xlu0 %766, %v693
        %v768 = vpop.permute.xlu0 %767
        %771 = vset.pattern.permute.xlu0 0
        %772 = vperm.xlu0 %771, %v694
        %v773 = vpop.permute.xlu0 %772
        %v775 = vadd.f32 %v663, %v698
        %v776 = vadd.f32 %v664, %v703
        %v777 = vadd.f32 %v665, %v708
        %v778 = vadd.f32 %v666, %v713
        %v779 = vadd.f32 %v667, %v718
        %v780 = vadd.f32 %v668, %v723
        %v781 = vadd.f32 %v669, %v728
        %v782 = vadd.f32 %v670, %v733
        %v783 = vadd.f32 %v671, %v738
        %v784 = vadd.f32 %v672, %v743
        %v785 = vadd.f32 %v673, %v748
        %v786 = vadd.f32 %v674, %v753
        %v787 = vadd.f32 %v675, %v758
        %v788 = vadd.f32 %v676, %v763
        %v789 = vadd.f32 %v677, %v768
        %v790 = vadd.f32 %v678, %v773
        %v791 = vmul.f32 %v551, %v775
        %v792 = vmul.f32 %v552, %v776
        %v793 = vmul.f32 %v553, %v777
        %v794 = vmul.f32 %v554, %v778
        %v795 = vmul.f32 %v555, %v779
        %v796 = vmul.f32 %v556, %v780
        %v797 = vmul.f32 %v557, %v781
        %v798 = vmul.f32 %v558, %v782
        %v799 = vmul.f32 %v559, %v783
        %v800 = vmul.f32 %v560, %v784
        %v801 = vmul.f32 %v561, %v785
        %v802 = vmul.f32 %v562, %v786
        %v803 = vmul.f32 %v563, %v787
        %v804 = vmul.f32 %v564, %v788
        %v805 = vmul.f32 %v565, %v789
        %v806 = vmul.f32 %v566, %v790
        %v807 = vadd.f32 %v791, %v792
        %v808 = vadd.f32 %v807, %v793
        %v809 = vadd.f32 %v808, %v794
        %v810 = vadd.f32 %v809, %v795
        %v811 = vadd.f32 %v810, %v796
        %v812 = vadd.f32 %v811, %v797
        %v813 = vadd.f32 %v812, %v798
        %v814 = vadd.f32 %v813, %v799
        %v815 = vadd.f32 %v814, %v800
        %v816 = vadd.f32 %v815, %v801
        %v817 = vadd.f32 %v816, %v802
        %v818 = vadd.f32 %v817, %v803
        %v819 = vadd.f32 %v818, %v804
        %v820 = vadd.f32 %v819, %v805
        %v821 = vadd.f32 %v820, %v806
        %v822 = vrot.slane %v821, 4
        %v823 = vadd.f32 %v821, %v822
        %v824 = vrot.slane %v823, 2
        %v825 = vadd.f32 %v823, %v824
        %v826 = vrot.slane %v825, 1
        %v827 = vadd.f32 %v825, %v826
        %v828 = vadd.f32 %v551, %v552
        %v829 = vadd.f32 %v828, %v553
        %v830 = vadd.f32 %v829, %v554
        %v831 = vadd.f32 %v830, %v555
        %v832 = vadd.f32 %v831, %v556
        %v833 = vadd.f32 %v832, %v557
        %v834 = vadd.f32 %v833, %v558
        %v835 = vadd.f32 %v834, %v559
        %v836 = vadd.f32 %v835, %v560
        %v837 = vadd.f32 %v836, %v561
        %v838 = vadd.f32 %v837, %v562
        %v839 = vadd.f32 %v838, %v563
        %v840 = vadd.f32 %v839, %v564
        %v841 = vadd.f32 %v840, %v565
        %v842 = vadd.f32 %v841, %v566
        %v843 = vrot.slane %v842, 4
        %v844 = vadd.f32 %v842, %v843
        %v845 = vrot.slane %v844, 2
        %v846 = vadd.f32 %v844, %v845
        %v847 = vrot.slane %v846, 1
        %v848 = vadd.f32 %v846, %v847
        %v849 = vmul.f32 %v848, 0.03125
        %v850 = vrcp.pop %v849
        %v851 = vmul.f32 %v827, %v850
        %852 = vst [vmem:[%s217] sm:$0x1] %v851
        %s853 = sand.u32 %s137, 1
        %s854 = scalar_lea.sflag [#allocation3], %s853
        %s855 = sand.u32 %s137, 1
        %s856 = scalar_lea.vmem [#allocation2], %s855
        // Predicated region
        $region41: #{tpu_custom_call.1} parent=39 // pred_check
          %p857 = pneg %p147
        $region42: #{tpu_custom_call.1} parent=39 // pred_check_branch
          %859 = sbr.rel (%p857) target = $region44
        $region43: #{tpu_custom_call.1} parent=39 // pred_region
          %s861 = ssub.s32 16, 16
          %862 = vsyncadd %s854, %s861
          %s863 = smul.addr %s19, 16
          %s864 = scalar_lea.hbm %s5, %s863
          %s866 = sshll.u32 %s856, 4
          %s867 = int_to_ptr.vmem [resolvable:$true] %s866
          %869 = dma.vmem_to_hbm [thread:$0]  %s867, 16, %s864, %s854
        $region44: #{tpu_custom_call.1} parent=39 // pred_fallthru
          _
      $region40: #{tpu_custom_call.1} parent=5 // pred_fallthru
        _
      %p870 = scmp.le.s32.totalorder 2, %s14
      // Predicated region
      $region45: #{tpu_custom_call.1} parent=5 // pred_check
        %p871 = pneg %p870
      $region46: #{tpu_custom_call.1} parent=5 // pred_check_branch
        %873 = sbr.rel (%p871) target = $region48
      $region47: #{tpu_custom_call.1} parent=5 // pred_region
        %s874 = ssub.s32 %s14, 2
        // Predicated region
        $region49: #{tpu_custom_call.1} parent=47 // pred_check
          %p875 = pneg %p153
        $region50: #{tpu_custom_call.1} parent=47 // pred_check_branch
          %877 = sbr.rel (%p875) target = $region52
        $region51: #{tpu_custom_call.1} parent=47 // pred_region
          %s878 = sand.u32 %s138, 1
          %s879 = scalar_lea.sflag [#allocation3], %s878
          %s880 = sand.u32 %s138, 1
          %s881 = scalar_lea.vmem [#allocation2], %s880
          %882 = dma.done %s879, 16
        $region52: #{tpu_custom_call.1} parent=47 // pred_fallthru
          _
      $region48: #{tpu_custom_call.1} parent=5 // pred_fallthru
        _
    $region6: #{tpu_custom_call.1} parent=1 // loop_footer
      %s18 = sadd.s32 1, %s14
    $region7: #{tpu_custom_call.1} parent=1 // loop_footer_branch
      %13 = sbr.rel target = $region3
    $region8: #{tpu_custom_call.1} parent=1 // loop_exit
      _
    %883 = vsyncpa [#allocation3], 1
    %s884 = scalar_lea.sflag [#allocation3], 1
    %885 = vsyncpa %s884, 1

</llo_original>
